<compile_context>
chip_gen: v7x
topology: tpu7x:2x2x1
jax: 0.10.0
libtpu: 0.0.40
codegen_flags: <defaults>
</compile_context>

<pallas_src>
import numpy as np
import jax
import jax.numpy as jnp
from jax.experimental import pallas as pl
from jax.experimental.pallas import tpu as pltpu


def _round_up(n, m):
    return ((n + m - 1) // m) * m


def _nbytes(a):
    return int(np.prod(a.shape)) * jnp.dtype(a.dtype).itemsize


# ---------------------------------------------------------------------------
# Kernel: 3 fused matmuls (shared trunk, fused head-1, fused block-diag head-2)
# ---------------------------------------------------------------------------
def _evoac_fwd_kernel(pop_ref,                      # scalar-prefetch (unused in body)
                      x_ref, ws_ref, bs_ref,        # shared Linear
                      w1_ref, b1_ref,               # fused policy/value Linear 1
                      w2_ref, b2_ref,               # fused block-diag Linear 2
                      out_ref):
    # shared trunk: Linear + ReLU  (bf16 MXU, f32 accumulate, f32 elementwise)
    shared = jnp.dot(x_ref[...], ws_ref[...], preferred_element_type=jnp.float32)
    shared = jnp.maximum(shared + bs_ref[...], 0.0).astype(jnp.bfloat16)

    # fused first layer of both heads: [TB, H] @ [H, fused]
    h = jnp.dot(shared, w1_ref[...], preferred_element_type=jnp.float32)
    h = jnp.maximum(h + b1_ref[...], 0.0).astype(jnp.bfloat16)

    # fused second layer (block-diagonal): [TB, fused] @ [fused, 128] -> lane-dense
    out = jnp.dot(h, w2_ref[...], preferred_element_type=jnp.float32) + b2_ref[...]
    out_ref[...] = out.astype(out_ref.dtype)


# ---------------------------------------------------------------------------
# Parameter init (PyTorch-style, logical f32 shapes) and host-side packing
# ---------------------------------------------------------------------------
def init_params(key, obs_dim, hidden, n_actions, pop_size):
    """Deterministic PyTorch-style (uniform +/- 1/sqrt(fan_in)) init, f32."""
    def linear(k, fan_in, shape):
        bound = 1.0 / jnp.sqrt(jnp.float32(fan_in))
        return jax.random.uniform(k, shape, jnp.float32, -bound, bound)

    ks = jax.random.split(key, 10)
    return {
        # shared
        "ws": linear(ks[0], obs_dim, (obs_dim, hidden)),
        "bs": linear(ks[1], obs_dim, (1, hidden)),
        # policy population (stacked over pop_size)
        "wp1": linear(ks[2], hidden, (pop_size, hidden, hidden)),
        "bp1": linear(ks[3], hidden, (pop_size, 1, hidden)),
        "wp2": linear(ks[4], hidden, (pop_size, hidden, n_actions)),
        "bp2": linear(ks[5], hidden, (pop_size, 1, n_actions)),
        # value
        "wv1": linear(ks[6], hidden, (hidden, hidden)),
        "bv1": linear(ks[7], hidden, (1, hidden)),
        "wv2": linear(ks[8], hidden, (hidden, 1)),
        "bv2": linear(ks[9], hidden, (1, 1)),
    }


def pack_params(params, n_actions):
    """One-time host-side fuse + pad + bf16 cast of the kernel-side parameters."""
    pop, hid, _ = params["wp1"].shape
    obs = params["ws"].shape[0]

    obs_pad = _round_up(obs, 128)
    hid_pad = _round_up(hid, 128)
    # Compact fused head width: policy-hidden cols [0:hid), value-hidden [hid:2*hid).
    # Pad to 128 when it fits one vreg lane group, otherwise to 256-multiples so the
    # v6e/v7x 2x256x256 MXU gets full passes (v5e's 128x128 MXU is indifferent).
    fused = 2 * hid
    fused_pad = 128 if fused <= 128 else _round_up(fused, 256)
    out_pad = _round_up(n_actions + 1, 128)     # policy lanes + 1 value lane

    ws = jnp.zeros((obs_pad, hid_pad), jnp.float32).at[:obs, :hid].set(params["ws"])
    bs = jnp.zeros((1, hid_pad), jnp.float32).at[:, :hid].set(params["bs"])

    # fused first layer: cols [0:hid) = policy hidden, [hid:2*hid) = value hidden
    # NOTE: value-head weights are replicated pop_size times (HBM-capacity cost only,
    # accepted to keep a single fused matmul per layer; only one slice is DMA'd).
    w1 = jnp.zeros((pop, hid_pad, fused_pad), jnp.float32)
    w1 = w1.at[:, :hid, :hid].set(params["wp1"])
    w1 = w1.at[:, :hid, hid:2 * hid].set(
        jnp.broadcast_to(params["wv1"], (pop, hid, hid)))
    b1 = jnp.zeros((pop, 1, fused_pad), jnp.float32)
    b1 = b1.at[:, :, :hid].set(params["bp1"])
    b1 = b1.at[:, :, hid:2 * hid].set(
        jnp.broadcast_to(params["bv1"], (pop, 1, hid)))

    # fused second layer (block-diagonal): policy rows [0:hid) -> lanes [0:n_act),
    # value rows [hid:2*hid) -> lane n_act.  Output is lane-dense [*, out_pad].
    w2 = jnp.zeros((pop, fused_pad, out_pad), jnp.float32)
    w2 = w2.at[:, :hid, :n_actions].set(params["wp2"])
    w2 = w2.at[:, hid:2 * hid, n_actions].set(
        jnp.broadcast_to(params["wv2"][:, 0], (pop, hid)))
    b2 = jnp.zeros((pop, 1, out_pad), jnp.float32)
    b2 = b2.at[:, :, :n_actions].set(params["bp2"])
    b2 = b2.at[:, :, n_actions].set(params["bv2"][0, 0])

    return {
        "ws": ws.astype(jnp.bfloat16), "bs": bs,
        "w1": w1.astype(jnp.bfloat16), "b1": b1,
        "w2": w2.astype(jnp.bfloat16), "b2": b2,
        "obs": obs, "n_actions": n_actions, "pop_size": pop,
    }


def _batch_tile(B):
    """Batch tile (multiple of 16) + padded batch; >=2 grid steps when feasible
    so the 'parallel' axis can shard across v7x's two TensorCores."""
    b16 = _round_up(max(B, 1), 16)
    if b16 < 32:
        return b16, b16                         # too small to split
    tb = min(512, max(16, (b16 // 2) // 16 * 16))
    b_pad = _round_up(b16, tb)
    return tb, b_pad


# ---------------------------------------------------------------------------
# Forward wrapper
# ---------------------------------------------------------------------------
def evoac_forward(x, packed, pop_idx):
    """Fused Pallas forward.  x: [B, obs_dim] f32.  Returns (policy, value)."""
    B, obs = x.shape
    n_actions = packed["n_actions"]
    obs_pad, hid_pad = packed["ws"].shape
    fused_pad = packed["w1"].shape[-1]
    out_pad = packed["w2"].shape[-1]

    TB, B_pad = _batch_tile(B)

    x_p = jnp.zeros((B_pad, obs_pad), jnp.bfloat16).at[:B, :obs].set(
        x.astype(jnp.bfloat16))
    # clamp before using as a DMA block index (graceful instead of OOB DMA)
    pop_clamped = jnp.clip(jnp.asarray(pop_idx, jnp.int32), 0, packed["pop_size"] - 1)
    pop_arr = pop_clamped.reshape((1,))

    # Explicit scoped-VMEM budget: resident weights + double-buffered streamed
    # x/out tiles, with headroom; capped at 64 MiB so it is valid on v7x too.
    weight_bytes = (_nbytes(packed["ws"]) + _nbytes(packed["bs"])
                    + _nbytes(packed["w1"][0]) + _nbytes(packed["b1"][0])
                    + _nbytes(packed["w2"][0]) + _nbytes(packed["b2"][0]))
    stream_bytes = TB * obs_pad * 2 + TB * out_pad * 4
    vmem_est = 2 * (weight_bytes + stream_bytes)
    vmem_limit = int(min(64 << 20, max(32 << 20, 3 * vmem_est // 2)))

    # NOTE: the weight blocks are grid-invariant (constant index_map); if hidden is
    # scaled far past ~1024 consider pipeline_mode=pl.Buffered(1) on them to drop
    # the duplicate pipeline buffer (only x/out benefit from double buffering).
    out = pl.pallas_call(
        _evoac_fwd_kernel,
        out_shape=jax.ShapeDtypeStruct((B_pad, out_pad), jnp.float32),
        grid_spec=pltpu.PrefetchScalarGridSpec(
            num_scalar_prefetch=1,
            grid=(B_pad // TB,),
            in_specs=[
                pl.BlockSpec((TB, obs_pad), lambda i, pop: (i, 0)),
                pl.BlockSpec((obs_pad, hid_pad), lambda i, pop: (0, 0)),
                pl.BlockSpec((1, hid_pad), lambda i, pop: (0, 0)),
                pl.BlockSpec((None, hid_pad, fused_pad), lambda i, pop: (pop[0], 0, 0)),
                pl.BlockSpec((None, 1, fused_pad), lambda i, pop: (pop[0], 0, 0)),
                pl.BlockSpec((None, fused_pad, out_pad), lambda i, pop: (pop[0], 0, 0)),
                pl.BlockSpec((None, 1, out_pad), lambda i, pop: (pop[0], 0, 0)),
            ],
            out_specs=pl.BlockSpec((TB, out_pad), lambda i, pop: (i, 0)),
        ),
        compiler_params=pltpu.CompilerParams(
            dimension_semantics=("parallel",),
            vmem_limit_bytes=vmem_limit),
    )(pop_arr, x_p, packed["ws"], packed["bs"],
      packed["w1"], packed["b1"], packed["w2"], packed["b2"])

    # Padded rows [B:B_pad] hold bias-propagated garbage; slice before any consumer.
    policy = out[:B, :n_actions]
    value = out[:B, n_actions:n_actions + 1]
    return policy, value


# ---------------------------------------------------------------------------
# Pure-JAX references
# ---------------------------------------------------------------------------
def evoac_forward_ref(x, params, pop_idx):
    """f32 reference (exact PyTorch module semantics)."""
    shared = jnp.maximum(x @ params["ws"] + params["bs"], 0.0)
    p = jnp.maximum(shared @ params["wp1"][pop_idx] + params["bp1"][pop_idx], 0.0)
    policy = p @ params["wp2"][pop_idx] + params["bp2"][pop_idx]
    v = jnp.maximum(shared @ params["wv1"] + params["bv1"], 0.0)
    value = v @ params["wv2"] + params["bv2"]
    return policy, value


def evoac_forward_ref_bf16(x, params, pop_idx):
    """Reference mirroring the kernel's bf16-storage / f32-accumulate numerics."""
    b = lambda a: a.astype(jnp.bfloat16).astype(jnp.float32)
    xb = b(x)
    shared = jnp.maximum(xb @ b(params["ws"]) + params["bs"], 0.0)
    shared = b(shared)
    p = jnp.maximum(shared @ b(params["wp1"][pop_idx]) + params["bp1"][pop_idx], 0.0)
    policy = b(p) @ b(params["wp2"][pop_idx]) + params["bp2"][pop_idx]
    v = jnp.maximum(shared @ b(params["wv1"]) + params["bv1"], 0.0)
    value = b(v) @ b(params["wv2"]) + params["bv2"]
    return policy, value


# TODO(synk): extract_params / insert_params / extract_grads and the Adam optimizer
# are host-side parameter plumbing with no kernel equivalent; get_action's
# softmax + Categorical sampling is likewise left to plain JAX.

if __name__ == "__main__":
    B, OBS, HID, NACT, POP = 2, 16, 32, 8, 3
    key = jax.random.PRNGKey(0)
    kx, kp = jax.random.split(key)

    x = jax.random.normal(kx, (B, OBS), jnp.float32)
    params = init_params(kp, OBS, HID, NACT, POP)
    packed = pack_params(params, NACT)
    pop_idx = 1

    policy, value = evoac_forward(x, packed, pop_idx)
    jax.block_until_ready((policy, value))

    assert policy.shape == (B, NACT) and value.shape == (B, 1)

    # tight check against a reference with identical bf16 weight rounding
    pol_bref, val_bref = evoac_forward_ref_bf16(x, params, pop_idx)
    assert jnp.allclose(policy, pol_bref, atol=2e-3, rtol=2e-3)
    assert jnp.allclose(value, val_bref, atol=2e-3, rtol=2e-3)

    # looser check against the exact f32 module semantics
    pol_ref, val_ref = evoac_forward_ref(x, params, pop_idx)
    assert jnp.allclose(policy, pol_ref, atol=5e-2, rtol=5e-2)
    assert jnp.allclose(value, val_ref, atol=5e-2, rtol=5e-2)

    print("KERNEL_OK")
</pallas_src>

<mosaic_0001>
module attributes {stable_mosaic.version = 11 : i64} {
  func.func @_evoac_fwd_kernel(%arg0: i32, %arg1: memref<1xi32, #tpu.memory_space<smem>>, %arg2: memref<16x128xbf16, #tpu.memory_space<vmem>>, %arg3: memref<128x128xbf16, #tpu.memory_space<vmem>>, %arg4: memref<1x128xf32, #tpu.memory_space<vmem>>, %arg5: memref<1x128x128xbf16, #tpu.memory_space<vmem>>, %arg6: memref<1x1x128xf32, #tpu.memory_space<vmem>>, %arg7: memref<1x128x128xbf16, #tpu.memory_space<vmem>>, %arg8: memref<1x1x128xf32, #tpu.memory_space<vmem>>, %arg9: memref<16x128xf32, #tpu.memory_space<vmem>>) attributes {dimension_semantics = [#tpu.dimension_semantics<parallel>], iteration_bounds = array<i64: 1>, scalar_prefetch = 1 : i64, scratch_operands = 0 : i64, tpu.core_type = #tpu.core_type<tc>, window_params = [{transform_indices = @transform_0, window_bounds = array<i64: 16, 128>}, {pipeline_mode = #tpu.pipeline_mode<synchronous>, transform_indices = @transform_1, window_bounds = array<i64: 128, 128>}, {pipeline_mode = #tpu.pipeline_mode<synchronous>, transform_indices = @transform_2, window_bounds = array<i64: 1, 128>}, {transform_indices = @transform_3, window_bounds = array<i64: 1, 128, 128>}, {transform_indices = @transform_4, window_bounds = array<i64: 1, 1, 128>}, {transform_indices = @transform_5, window_bounds = array<i64: 1, 128, 128>}, {transform_indices = @transform_6, window_bounds = array<i64: 1, 1, 128>}, {transform_indices = @transform_7, window_bounds = array<i64: 16, 128>}]} {
    %c0 = arith.constant 0 : index
    %c0_0 = arith.constant 0 : index
    %0 = vector.load %arg2[%c0, %c0_0] : memref<16x128xbf16, #tpu.memory_space<vmem>>, vector<16x128xbf16>
    %c0_1 = arith.constant 0 : index
    %c0_2 = arith.constant 0 : index
    %1 = vector.load %arg3[%c0_1, %c0_2] : memref<128x128xbf16, #tpu.memory_space<vmem>>, vector<128x128xbf16>
    %cst = arith.constant dense<0.000000e+00> : vector<16x128xf32>
    %2 = tpu.matmul %0, %1, %cst {dimension_numbers = #tpu.dot_dimension_numbers<[1], [0], [0], [1], [0, 0, 1, 1], [], []>} : vector<16x128xbf16>, vector<128x128xbf16>, vector<16x128xf32> -> vector<16x128xf32>
    %c0_3 = arith.constant 0 : index
    %c0_4 = arith.constant 0 : index
    %3 = vector.load %arg4[%c0_3, %c0_4] : memref<1x128xf32, #tpu.memory_space<vmem>>, vector<1x128xf32>
    %4 = vector.broadcast %3 : vector<1x128xf32> to vector<16x128xf32>
    %5 = arith.addf %2, %4 : vector<16x128xf32>
    %cst_5 = arith.constant 0.000000e+00 : f32
    %6 = vector.broadcast %cst_5 : f32 to vector<16x128xf32>
    %7 = arith.maximumf %5, %6 : vector<16x128xf32>
    %8 = arith.truncf %7 : vector<16x128xf32> to vector<16x128xbf16>
    %c0_6 = arith.constant 0 : index
    %c0_7 = arith.constant 0 : index
    %c0_8 = arith.constant 0 : index
    %9 = vector.load %arg5[%c0_6, %c0_7, %c0_8] : memref<1x128x128xbf16, #tpu.memory_space<vmem>>, vector<1x128x128xbf16>
    %10 = vector.shape_cast %9 : vector<1x128x128xbf16> to vector<128x128xbf16>
    %cst_9 = arith.constant dense<0.000000e+00> : vector<16x128xf32>
    %11 = tpu.matmul %8, %10, %cst_9 {dimension_numbers = #tpu.dot_dimension_numbers<[1], [0], [0], [1], [0, 0, 1, 1], [], []>} : vector<16x128xbf16>, vector<128x128xbf16>, vector<16x128xf32> -> vector<16x128xf32>
    %c0_10 = arith.constant 0 : index
    %c0_11 = arith.constant 0 : index
    %c0_12 = arith.constant 0 : index
    %12 = vector.load %arg6[%c0_10, %c0_11, %c0_12] : memref<1x1x128xf32, #tpu.memory_space<vmem>>, vector<1x1x128xf32>
    %13 = vector.shape_cast %12 : vector<1x1x128xf32> to vector<1x128xf32>
    %14 = vector.broadcast %13 : vector<1x128xf32> to vector<16x128xf32>
    %15 = arith.addf %11, %14 : vector<16x128xf32>
    %cst_13 = arith.constant 0.000000e+00 : f32
    %16 = vector.broadcast %cst_13 : f32 to vector<16x128xf32>
    %17 = arith.maximumf %15, %16 : vector<16x128xf32>
    %18 = arith.truncf %17 : vector<16x128xf32> to vector<16x128xbf16>
    %c0_14 = arith.constant 0 : index
    %c0_15 = arith.constant 0 : index
    %c0_16 = arith.constant 0 : index
    %19 = vector.load %arg7[%c0_14, %c0_15, %c0_16] : memref<1x128x128xbf16, #tpu.memory_space<vmem>>, vector<1x128x128xbf16>
    %20 = vector.shape_cast %19 : vector<1x128x128xbf16> to vector<128x128xbf16>
    %cst_17 = arith.constant dense<0.000000e+00> : vector<16x128xf32>
    %21 = tpu.matmul %18, %20, %cst_17 {dimension_numbers = #tpu.dot_dimension_numbers<[1], [0], [0], [1], [0, 0, 1, 1], [], []>} : vector<16x128xbf16>, vector<128x128xbf16>, vector<16x128xf32> -> vector<16x128xf32>
    %c0_18 = arith.constant 0 : index
    %c0_19 = arith.constant 0 : index
    %c0_20 = arith.constant 0 : index
    %22 = vector.load %arg8[%c0_18, %c0_19, %c0_20] : memref<1x1x128xf32, #tpu.memory_space<vmem>>, vector<1x1x128xf32>
    %23 = vector.shape_cast %22 : vector<1x1x128xf32> to vector<1x128xf32>
    %24 = vector.broadcast %23 : vector<1x128xf32> to vector<16x128xf32>
    %25 = arith.addf %21, %24 : vector<16x128xf32>
    %c0_21 = arith.constant 0 : index
    %c0_22 = arith.constant 0 : index
    %26 = vector.load %arg9[%c0_21, %c0_22] : memref<16x128xf32, #tpu.memory_space<vmem>>, vector<16x128xf32>
    tpu.vector_store %arg9[%c0_21, %c0_22], %25 {strides = array<i32>} : memref<16x128xf32, #tpu.memory_space<vmem>>, vector<16x128xf32>,
    return
  }
  func.func @transform_0(%arg0: i32, %arg1: memref<1xi32, #tpu.memory_space<smem>>) -> (i32, i32) {
    %c0_i32 = arith.constant 0 : i32
    %c0_i32_0 = arith.constant 0 : i32
    return %arg0, %c0_i32 : i32, i32
  }
  func.func @transform_1(%arg0: i32, %arg1: memref<1xi32, #tpu.memory_space<smem>>) -> (i32, i32) {
    %c0_i32 = arith.constant 0 : i32
    %c0_i32_0 = arith.constant 0 : i32
    %c0_i32_1 = arith.constant 0 : i32
    return %c0_i32, %c0_i32_0 : i32, i32
  }
  func.func @transform_2(%arg0: i32, %arg1: memref<1xi32, #tpu.memory_space<smem>>) -> (i32, i32) {
    %c0_i32 = arith.constant 0 : i32
    %c0_i32_0 = arith.constant 0 : i32
    %c0_i32_1 = arith.constant 0 : i32
    return %c0_i32, %c0_i32_0 : i32, i32
  }
  func.func @transform_3(%arg0: i32, %arg1: memref<1xi32, #tpu.memory_space<smem>>) -> (i32, i32, i32) {
    %c0 = arith.constant 0 : index
    %0 = memref.load %arg1[%c0] : memref<1xi32, #tpu.memory_space<smem>>
    %c0_i32 = arith.constant 0 : i32
    %c0_i32_0 = arith.constant 0 : i32
    %c0_i32_1 = arith.constant 0 : i32
    return %0, %c0_i32, %c0_i32_0 : i32, i32, i32
  }
  func.func @transform_4(%arg0: i32, %arg1: memref<1xi32, #tpu.memory_space<smem>>) -> (i32, i32, i32) {
    %c0 = arith.constant 0 : index
    %0 = memref.load %arg1[%c0] : memref<1xi32, #tpu.memory_space<smem>>
    %c0_i32 = arith.constant 0 : i32
    %c0_i32_0 = arith.constant 0 : i32
    %c0_i32_1 = arith.constant 0 : i32
    return %0, %c0_i32, %c0_i32_0 : i32, i32, i32
  }
  func.func @transform_5(%arg0: i32, %arg1: memref<1xi32, #tpu.memory_space<smem>>) -> (i32, i32, i32) {
    %c0 = arith.constant 0 : index
    %0 = memref.load %arg1[%c0] : memref<1xi32, #tpu.memory_space<smem>>
    %c0_i32 = arith.constant 0 : i32
    %c0_i32_0 = arith.constant 0 : i32
    %c0_i32_1 = arith.constant 0 : i32
    return %0, %c0_i32, %c0_i32_0 : i32, i32, i32
  }
  func.func @transform_6(%arg0: i32, %arg1: memref<1xi32, #tpu.memory_space<smem>>) -> (i32, i32, i32) {
    %c0 = arith.constant 0 : index
    %0 = memref.load %arg1[%c0] : memref<1xi32, #tpu.memory_space<smem>>
    %c0_i32 = arith.constant 0 : i32
    %c0_i32_0 = arith.constant 0 : i32
    %c0_i32_1 = arith.constant 0 : i32
    return %0, %c0_i32, %c0_i32_0 : i32, i32, i32
  }
  func.func @transform_7(%arg0: i32, %arg1: memref<1xi32, #tpu.memory_space<smem>>) -> (i32, i32) {
    %c0_i32 = arith.constant 0 : i32
    %c0_i32_0 = arith.constant 0 : i32
    return %arg0, %c0_i32 : i32, i32
  }
}

</mosaic_0001>

<llo_original>
// kernel: tpu_custom_call.1
$region0: #{tpu_custom_call.1}
  #allocation0 [shape = 'u32[]', space=smem, size = 0x4, offset = 0x4, fixed_abs, tag = 'smem constant byte address 0x4 - core index']
  #allocation1 [shape = 'u32[144,128]{1,0:T(1,128)}', space=vmem, size = 0x12000, scoped, tag = 'internal scratch']
  #allocation2 [shape = 's32[1]{0}', space=sflag, size = 0x4, scoped, tag = 'scoped memory for tpu_custom_call.1']
  #allocation3 [shape = 's32[1]{0:T(128)S(6)}', space=smem, size = 0x200, scoped, tag = 'prefetched SMEM operand 0']
  %s0 = inlined_call_operand.<no memory space> [shape: s32[1], index: 0, kind: input, shape index: {}]
  %s1 = inlined_call_operand.hbm [shape: bf16[16,128], index: 1, kind: input, shape index: {}]
  %s2 = inlined_call_operand.hbm [shape: bf16[128,128], index: 2, kind: input, shape index: {}]
  %s3 = inlined_call_operand.vmem [shape: f32[1,128], index: 3, kind: input, shape index: {}]
  %s4 = inlined_call_operand.hbm [shape: bf16[3,128,128], index: 4, kind: input, shape index: {}]
  %s5 = inlined_call_operand.vmem [shape: f32[3,1,128], index: 5, kind: input, shape index: {}]
  %s6 = inlined_call_operand.hbm [shape: bf16[3,128,128], index: 6, kind: input, shape index: {}]
  %s7 = inlined_call_operand.vmem [shape: f32[3,1,128], index: 7, kind: input, shape index: {}]
  %s8 = inlined_call_operand.hbm [shape: f32[16,128], index: 8, kind: output, shape index: {}]
  %s9 = sld [smem:[#allocation0]]
  $region54: #{tpu_custom_call.1} parent=0
    _
  %s11 = ssub.s32 1, %s9
  %s12 = scalar_select 0, %s11, %s9
  %13 = sst [smem:[#allocation3]] %s0
  $region1: #{tpu_custom_call.1} parent=0
    #allocation4 [shape = 'u8[4096]{0}', space=vmem, size = 0x1000, scoped, tag = 'input window, operand 1, single buffered']
    #allocation5 [shape = 's32[1]{0}', space=sflag, size = 0x4, scoped, tag = 'scoped memory for tpu_custom_call.1']
    #allocation6 [shape = 's32[1]{0}', space=sflag, size = 0x4, scoped, tag = 'scoped memory for tpu_custom_call.1']
    #allocation7 [shape = 'u8[32768]{0}', space=vmem, size = 0x8000, scoped, tag = 'input window, operand 2, single buffered']
    #allocation8 [shape = 's32[1]{0}', space=sflag, size = 0x4, scoped, tag = 'scoped memory for tpu_custom_call.1']
    #allocation9 [shape = 'u8[32768]{0}', space=vmem, size = 0x8000, scoped, tag = 'input window, operand 4, single buffered']
    #allocation10 [shape = 'u8[32768]{0}', space=vmem, size = 0x8000, scoped, tag = 'input window, operand 6, single buffered']
    #allocation11 [shape = 's32[1]{0}', space=sflag, size = 0x4, scoped, tag = 'scoped memory for tpu_custom_call.1']
    #allocation12 [shape = 'u8[8192]{0}', space=vmem, size = 0x2000, scoped, tag = 'output window, operand 0, single buffered']
    %14 = vsyncpa [#allocation5], 0
    %15 = vsyncpa [#allocation8], 0
    %16 = vsyncpa [#allocation11], 0
    %17 = vsyncpa [#allocation6], 0
    // Predicated region
    $region2: #{tpu_custom_call.1} parent=1 // pred_check
      _
    $region3: #{tpu_custom_call.1} parent=1 // pred_check_branch
      %19 = sbr.rel (0) target = $region5
    $region4: #{tpu_custom_call.1} parent=1 // pred_region
      %s21 = ssub.s32 128, 128
      %22 = vsyncadd [#allocation5], %s21
      %s23 = sshll.u32 [#allocation4], 4
      %s24 = int_to_ptr.vmem [resolvable:$true] %s23
      %29 = dma.hbm_to_vmem [thread:$0]  %s1, 128, %s24, [#allocation5], 64, 64, 4
    $region5: #{tpu_custom_call.1} parent=1 // pred_fallthru
      _
    // Predicated region
    $region6: #{tpu_custom_call.1} parent=1 // pred_check
      _
    $region7: #{tpu_custom_call.1} parent=1 // pred_check_branch
      %31 = sbr.rel (0) target = $region9
    $region8: #{tpu_custom_call.1} parent=1 // pred_region
      %s33 = ssub.s32 1024, 1024
      %34 = vsyncadd [#allocation8], %s33
      %s35 = sshll.u32 [#allocation7], 4
      %s36 = int_to_ptr.vmem [resolvable:$true] %s35
      %41 = dma.hbm_to_vmem [thread:$0]  %s2, 1024, %s36, [#allocation8], 64, 64, 4
    $region9: #{tpu_custom_call.1} parent=1 // pred_fallthru
      _
    // Predicated region
    $region10: #{tpu_custom_call.1} parent=1 // pred_check
      _
    $region11: #{tpu_custom_call.1} parent=1 // pred_check_branch
      %43 = sbr.rel (0) target = $region13
    $region12: #{tpu_custom_call.1} parent=1 // pred_region
      _
    $region13: #{tpu_custom_call.1} parent=1 // pred_fallthru
      _
    // Predicated region
    $region14: #{tpu_custom_call.1} parent=1 // pred_check
      _
    $region15: #{tpu_custom_call.1} parent=1 // pred_check_branch
      %45 = sbr.rel (0) target = $region17
    $region16: #{tpu_custom_call.1} parent=1 // pred_region
      %s46 = sld [smem:[#allocation3]]
      %s48 = ssub.s32 1024, 1024
      %49 = vsyncadd [#allocation8], %s48
      %s50 = smul.addr %s46, 16
      %s51 = smul.addr %s50, 64
      %s52 = scalar_lea.hbm %s4, %s51
      %s53 = sshll.u32 [#allocation9], 4
      %s54 = int_to_ptr.vmem [resolvable:$true] %s53
      %59 = dma.hbm_to_vmem [thread:$0]  %s52, 1024, %s54, [#allocation8], 64, 64, 4
    $region17: #{tpu_custom_call.1} parent=1 // pred_fallthru
      _
    // Predicated region
    $region18: #{tpu_custom_call.1} parent=1 // pred_check
      _
    $region19: #{tpu_custom_call.1} parent=1 // pred_check_branch
      %61 = sbr.rel (0) target = $region21
    $region20: #{tpu_custom_call.1} parent=1 // pred_region
      %s62 = sld [smem:[#allocation3]]
      %p63 = scmp.lt.s32.totalorder %s62, 2
      %s64 = scalar_select %p63, %s62, 2
      %s65 = scalar_lea.vmem %s5, %s64
      %s66 = sld [smem:[#allocation3]]
    $region21: #{tpu_custom_call.1} parent=1 // pred_fallthru
      _
    // Predicated region
    $region22: #{tpu_custom_call.1} parent=1 // pred_check
      _
    $region23: #{tpu_custom_call.1} parent=1 // pred_check_branch
      %68 = sbr.rel (0) target = $region25
    $region24: #{tpu_custom_call.1} parent=1 // pred_region
      %s69 = sld [smem:[#allocation3]]
      %s71 = ssub.s32 1024, 1024
      %72 = vsyncadd [#allocation11], %s71
      %s73 = smul.addr %s69, 16
      %s74 = smul.addr %s73, 64
      %s75 = scalar_lea.hbm %s6, %s74
      %s76 = sshll.u32 [#allocation10], 4
      %s77 = int_to_ptr.vmem [resolvable:$true] %s76
      %82 = dma.hbm_to_vmem [thread:$0]  %s75, 1024, %s77, [#allocation11], 64, 64, 4
    $region25: #{tpu_custom_call.1} parent=1 // pred_fallthru
      _
    // Predicated region
    $region26: #{tpu_custom_call.1} parent=1 // pred_check
      _
    $region27: #{tpu_custom_call.1} parent=1 // pred_check_branch
      %84 = sbr.rel (0) target = $region29
    $region28: #{tpu_custom_call.1} parent=1 // pred_region
      %s85 = sld [smem:[#allocation3]]
      %p86 = scmp.lt.s32.totalorder %s85, 2
      %s87 = scalar_select %p86, %s85, 2
      %s88 = scalar_lea.vmem %s7, %s87
      %s89 = sld [smem:[#allocation3]]
    $region29: #{tpu_custom_call.1} parent=1 // pred_fallthru
      _
    // Predicated region
    $region30: #{tpu_custom_call.1} parent=1 // pred_check
      _
    $region31: #{tpu_custom_call.1} parent=1 // pred_check_branch
      %91 = sbr.rel (0) target = $region33
    $region32: #{tpu_custom_call.1} parent=1 // pred_region
      %92 = dma.done [#allocation5], 128
    $region33: #{tpu_custom_call.1} parent=1 // pred_fallthru
      _
    // Predicated region
    $region34: #{tpu_custom_call.1} parent=1 // pred_check
      _
    $region35: #{tpu_custom_call.1} parent=1 // pred_check_branch
      %94 = sbr.rel (0) target = $region37
    $region36: #{tpu_custom_call.1} parent=1 // pred_region
      %95 = dma.done [#allocation8], 1024
    $region37: #{tpu_custom_call.1} parent=1 // pred_fallthru
      _
    // Predicated region
    $region38: #{tpu_custom_call.1} parent=1 // pred_check
      _
    $region39: #{tpu_custom_call.1} parent=1 // pred_check_branch
      %97 = sbr.rel (0) target = $region41
    $region40: #{tpu_custom_call.1} parent=1 // pred_region
      %98 = dma.done [#allocation8], 1024
    $region41: #{tpu_custom_call.1} parent=1 // pred_fallthru
      _
    // Predicated region
    $region42: #{tpu_custom_call.1} parent=1 // pred_check
      _
    $region43: #{tpu_custom_call.1} parent=1 // pred_check_branch
      %100 = sbr.rel (0) target = $region45
    $region44: #{tpu_custom_call.1} parent=1 // pred_region
      %101 = dma.done [#allocation11], 1024
    $region45: #{tpu_custom_call.1} parent=1 // pred_fallthru
      _
    %s102 = sld [smem:[#allocation3]]
    %p103 = scmp.lt.s32.totalorder %s102, 2
    %s104 = scalar_select %p103, %s102, 2
    %s105 = scalar_lea.vmem %s5, %s104
    %s106 = sld [smem:[#allocation3]]
    %p107 = scmp.lt.s32.totalorder %s106, 2
    %s108 = scalar_select %p107, %s106, 2
    %s109 = scalar_lea.vmem %s7, %s108
    %s110 = sld [smem:[#allocation3]]
    %s111 = sld [smem:[#allocation3]]
    %p112 = scmp.lt.s32.totalorder %s111, 2
    %s113 = scalar_select %p112, %s111, 2
    %s114 = scalar_lea.vmem %s5, %s113
    %s115 = sld [smem:[#allocation3]]
    %s116 = sld [smem:[#allocation3]]
    %s117 = sld [smem:[#allocation3]]
    %p118 = scmp.lt.s32.totalorder %s117, 2
    %s119 = scalar_select %p118, %s117, 2
    %s120 = scalar_lea.vmem %s7, %s119
    %s121 = sld [smem:[#allocation3]]
    %v123 = vld [vmem:[#allocation4] sm:$0xf]
    %v124 = vld [vmem:[#allocation4 + $0x4] sm:$0xf]
    %v125 = vld [vmem:[#allocation7] sm:$0xf]
    %v126 = vld [vmem:[#allocation7 + $0x4] sm:$0xf]
    %v127 = vld [vmem:[#allocation7 + $0x8] sm:$0xf]
    %v128 = vld [vmem:[#allocation7 + $0xc] sm:$0xf]
    %v129 = vld [vmem:[#allocation7 + $0x10] sm:$0xf]
    %v130 = vld [vmem:[#allocation7 + $0x14] sm:$0xf]
    %v131 = vld [vmem:[#allocation7 + $0x18] sm:$0xf]
    %v132 = vld [vmem:[#allocation7 + $0x1c] sm:$0xf]
    %v133 = vld [vmem:[#allocation7 + $0x20] sm:$0xf]
    %v134 = vld [vmem:[#allocation7 + $0x24] sm:$0xf]
    %v135 = vld [vmem:[#allocation7 + $0x28] sm:$0xf]
    %v136 = vld [vmem:[#allocation7 + $0x2c] sm:$0xf]
    %v137 = vld [vmem:[#allocation7 + $0x30] sm:$0xf]
    %v138 = vld [vmem:[#allocation7 + $0x34] sm:$0xf]
    %v139 = vld [vmem:[#allocation7 + $0x38] sm:$0xf]
    %v140 = vld [vmem:[#allocation7 + $0x3c] sm:$0xf]
    %v141 = vld [vmem:[%s3] sm:$0x1]
    %v143 = vlaneseq
    %v144 = vshrl.u32 %v143, 7
    %v145 = vsub.s32 0, %v144
    %v146 = vrot.slane %v141, %v145
    %v150 = vunpack.c.l.b16 %v123
    %v151 = vunpack.c.l.b16 %v124
    %v152 = vpack.c.b16 %v151, %v150
    %v170 = vunpack.c.l.b16 %v125
    %v171 = vunpack.c.l.b16 %v126
    %v172 = vunpack.c.l.b16 %v127
    %v173 = vunpack.c.l.b16 %v128
    %v174 = vunpack.c.l.b16 %v129
    %v175 = vunpack.c.l.b16 %v130
    %v176 = vunpack.c.l.b16 %v131
    %v177 = vunpack.c.l.b16 %v132
    %v178 = vunpack.c.l.b16 %v133
    %v179 = vunpack.c.l.b16 %v134
    %v180 = vunpack.c.l.b16 %v135
    %v181 = vunpack.c.l.b16 %v136
    %v182 = vunpack.c.l.b16 %v137
    %v183 = vunpack.c.l.b16 %v138
    %v184 = vunpack.c.l.b16 %v139
    %v185 = vunpack.c.l.b16 %v140
    %v186 = vpack.c.b16 %v171, %v170
    %v187 = vpack.c.b16 %v173, %v172
    %v188 = vpack.c.b16 %v175, %v174
    %v189 = vpack.c.b16 %v177, %v176
    %v190 = vpack.c.b16 %v179, %v178
    %v191 = vpack.c.b16 %v181, %v180
    %v192 = vpack.c.b16 %v183, %v182
    %v193 = vpack.c.b16 %v185, %v184
    %202 = vmatprep.subr.bf16.mxu0 0
    %203 = vmatpush1.bf16.msra.mxu0 %v186
    %204 = vmatprep.subr.bf16.mxu0 0
    %205 = vmatpush1.bf16.msra.mxu0 %v187
    %206 = vmatprep.subr.bf16.mxu0 0
    %207 = vmatpush1.bf16.msra.mxu0 %v188
    %208 = vmatprep.subr.bf16.mxu0 0
    %209 = vmatpush1.bf16.msra.mxu0 %v189
    %210 = vmatprep.subr.bf16.mxu0 0
    %211 = vmatpush1.bf16.msra.mxu0 %v190
    %212 = vmatprep.subr.bf16.mxu0 0
    %213 = vmatpush1.bf16.msra.mxu0 %v191
    %214 = vmatprep.subr.bf16.mxu0 0
    %215 = vmatpush1.bf16.msra.mxu0 %v192
    %216 = vmatprep.subr.bf16.mxu0 0
    %217 = vmatpush1.bf16.msra.mxu0 %v193
    %218 = vmatprep.subr.bf16.mxu0 0
    %219 = vmatpush1.bf16.msra.mxu0 0
    %220 = vmatprep.subr.bf16.mxu0 0
    %221 = vmatpush1.bf16.msra.mxu0 0
    %222 = vmatprep.subr.bf16.mxu0 0
    %223 = vmatpush1.bf16.msra.mxu0 0
    %224 = vmatprep.subr.bf16.mxu0 0
    %225 = vmatpush1.bf16.msra.mxu0 0
    %226 = vmatprep.subr.bf16.mxu0 0
    %227 = vmatpush1.bf16.msra.mxu0 0
    %228 = vmatprep.subr.bf16.mxu0 0
    %229 = vmatpush1.bf16.msra.mxu0 0
    %230 = vmatprep.subr.bf16.mxu0 0
    %231 = vmatpush1.bf16.msra.mxu0 0
    %232 = vmatprep.subr.bf16.mxu0 0
    %233 = vmatpush1.bf16.msra.mxu0 0
    %234 = vmatprep.mubr.bf16.mxu0 0
    %235 = vmatmul.mubr.bf16.gmra.mrb[0].mxu0 %v152
    %v236 = vpop.f32.mrb[0].mxu0
    %v237 = vadd.f32 %v146, %v236
    %v238 = vpop.f32.mrb[0].mxu0
    %v239 = vpop.f32.mrb[0].mxu0
    %v240 = vadd.f32 %v146, %v239
    %v241 = vpop.f32.mrb[0].mxu0
    %242 = vdwg.mxu0
    %v243 = vmax.f32 %v237, 0.0
    %v244 = vmax.f32 %v240, 0.0
    %v245 = vpack.c.bf16 %v244, %v243
    %v246 = vld [vmem:[#allocation9] sm:$0xf]
    %v247 = vld [vmem:[#allocation9 + $0x4] sm:$0xf]
    %v248 = vld [vmem:[#allocation9 + $0x8] sm:$0xf]
    %v249 = vld [vmem:[#allocation9 + $0xc] sm:$0xf]
    %v250 = vld [vmem:[#allocation9 + $0x10] sm:$0xf]
    %v251 = vld [vmem:[#allocation9 + $0x14] sm:$0xf]
    %v252 = vld [vmem:[#allocation9 + $0x18] sm:$0xf]
    %v253 = vld [vmem:[#allocation9 + $0x1c] sm:$0xf]
    %v254 = vld [vmem:[#allocation9 + $0x20] sm:$0xf]
    %v255 = vld [vmem:[#allocation9 + $0x24] sm:$0xf]
    %v256 = vld [vmem:[#allocation9 + $0x28] sm:$0xf]
    %v257 = vld [vmem:[#allocation9 + $0x2c] sm:$0xf]
    %v258 = vld [vmem:[#allocation9 + $0x30] sm:$0xf]
    %v259 = vld [vmem:[#allocation9 + $0x34] sm:$0xf]
    %v260 = vld [vmem:[#allocation9 + $0x38] sm:$0xf]
    %v261 = vld [vmem:[#allocation9 + $0x3c] sm:$0xf]
    %v262 = vld [vmem:[%s114] sm:$0x1]
    %v264 = vlaneseq
    %v265 = vshrl.u32 %v264, 7
    %v266 = vsub.s32 0, %v265
    %v267 = vrot.slane %v262, %v266
    %v285 = vunpack.c.l.b16 %v246
    %v286 = vunpack.c.l.b16 %v247
    %v287 = vunpack.c.l.b16 %v248
    %v288 = vunpack.c.l.b16 %v249
    %v289 = vunpack.c.l.b16 %v250
    %v290 = vunpack.c.l.b16 %v251
    %v291 = vunpack.c.l.b16 %v252
    %v292 = vunpack.c.l.b16 %v253
    %v293 = vunpack.c.l.b16 %v254
    %v294 = vunpack.c.l.b16 %v255
    %v295 = vunpack.c.l.b16 %v256
    %v296 = vunpack.c.l.b16 %v257
    %v297 = vunpack.c.l.b16 %v258
    %v298 = vunpack.c.l.b16 %v259
    %v299 = vunpack.c.l.b16 %v260
    %v300 = vunpack.c.l.b16 %v261
    %v301 = vpack.c.b16 %v286, %v285
    %v302 = vpack.c.b16 %v288, %v287
    %v303 = vpack.c.b16 %v290, %v289
    %v304 = vpack.c.b16 %v292, %v291
    %v305 = vpack.c.b16 %v294, %v293
    %v306 = vpack.c.b16 %v296, %v295
    %v307 = vpack.c.b16 %v298, %v297
    %v308 = vpack.c.b16 %v300, %v299
    %317 = vmatprep.subr.bf16.mxu0 0
    %318 = vmatpush1.bf16.msra.mxu0 %v301
    %319 = vmatprep.subr.bf16.mxu0 0
    %320 = vmatpush1.bf16.msra.mxu0 %v302
    %321 = vmatprep.subr.bf16.mxu0 0
    %322 = vmatpush1.bf16.msra.mxu0 %v303
    %323 = vmatprep.subr.bf16.mxu0 0
    %324 = vmatpush1.bf16.msra.mxu0 %v304
    %325 = vmatprep.subr.bf16.mxu0 0
    %326 = vmatpush1.bf16.msra.mxu0 %v305
    %327 = vmatprep.subr.bf16.mxu0 0
    %328 = vmatpush1.bf16.msra.mxu0 %v306
    %329 = vmatprep.subr.bf16.mxu0 0
    %330 = vmatpush1.bf16.msra.mxu0 %v307
    %331 = vmatprep.subr.bf16.mxu0 0
    %332 = vmatpush1.bf16.msra.mxu0 %v308
    %333 = vmatprep.subr.bf16.mxu0 0
    %334 = vmatpush1.bf16.msra.mxu0 0
    %335 = vmatprep.subr.bf16.mxu0 0
    %336 = vmatpush1.bf16.msra.mxu0 0
    %337 = vmatprep.subr.bf16.mxu0 0
    %338 = vmatpush1.bf16.msra.mxu0 0
    %339 = vmatprep.subr.bf16.mxu0 0
    %340 = vmatpush1.bf16.msra.mxu0 0
    %341 = vmatprep.subr.bf16.mxu0 0
    %342 = vmatpush1.bf16.msra.mxu0 0
    %343 = vmatprep.subr.bf16.mxu0 0
    %344 = vmatpush1.bf16.msra.mxu0 0
    %345 = vmatprep.subr.bf16.mxu0 0
    %346 = vmatpush1.bf16.msra.mxu0 0
    %347 = vmatprep.subr.bf16.mxu0 0
    %348 = vmatpush1.bf16.msra.mxu0 0
    %349 = vmatprep.mubr.bf16.mxu0 0
    %350 = vmatmul.mubr.bf16.gmra.mrb[0].mxu0 %v245
    %v351 = vpop.f32.mrb[0].mxu0
    %v352 = vadd.f32 %v267, %v351
    %v353 = vpop.f32.mrb[0].mxu0
    %v354 = vpop.f32.mrb[0].mxu0
    %v355 = vadd.f32 %v267, %v354
    %v356 = vpop.f32.mrb[0].mxu0
    %357 = vdwg.mxu0
    %v358 = vmax.f32 %v352, 0.0
    %v359 = vmax.f32 %v355, 0.0
    %v360 = vpack.c.bf16 %v359, %v358
    %v361 = vld [vmem:[#allocation10] sm:$0xf]
    %v362 = vld [vmem:[#allocation10 + $0x4] sm:$0xf]
    %v363 = vld [vmem:[#allocation10 + $0x8] sm:$0xf]
    %v364 = vld [vmem:[#allocation10 + $0xc] sm:$0xf]
    %v365 = vld [vmem:[#allocation10 + $0x10] sm:$0xf]
    %v366 = vld [vmem:[#allocation10 + $0x14] sm:$0xf]
    %v367 = vld [vmem:[#allocation10 + $0x18] sm:$0xf]
    %v368 = vld [vmem:[#allocation10 + $0x1c] sm:$0xf]
    %v369 = vld [vmem:[#allocation10 + $0x20] sm:$0xf]
    %v370 = vld [vmem:[#allocation10 + $0x24] sm:$0xf]
    %v371 = vld [vmem:[#allocation10 + $0x28] sm:$0xf]
    %v372 = vld [vmem:[#allocation10 + $0x2c] sm:$0xf]
    %v373 = vld [vmem:[#allocation10 + $0x30] sm:$0xf]
    %v374 = vld [vmem:[#allocation10 + $0x34] sm:$0xf]
    %v375 = vld [vmem:[#allocation10 + $0x38] sm:$0xf]
    %v376 = vld [vmem:[#allocation10 + $0x3c] sm:$0xf]
    %v377 = vld [vmem:[%s120] sm:$0x1]
    %v379 = vlaneseq
    %v380 = vshrl.u32 %v379, 7
    %v381 = vsub.s32 0, %v380
    %v382 = vrot.slane %v377, %v381
    %v400 = vunpack.c.l.b16 %v361
    %v401 = vunpack.c.l.b16 %v362
    %v402 = vunpack.c.l.b16 %v363
    %v403 = vunpack.c.l.b16 %v364
    %v404 = vunpack.c.l.b16 %v365
    %v405 = vunpack.c.l.b16 %v366
    %v406 = vunpack.c.l.b16 %v367
    %v407 = vunpack.c.l.b16 %v368
    %v408 = vunpack.c.l.b16 %v369
    %v409 = vunpack.c.l.b16 %v370
    %v410 = vunpack.c.l.b16 %v371
    %v411 = vunpack.c.l.b16 %v372
    %v412 = vunpack.c.l.b16 %v373
    %v413 = vunpack.c.l.b16 %v374
    %v414 = vunpack.c.l.b16 %v375
    %v415 = vunpack.c.l.b16 %v376
    %v416 = vpack.c.b16 %v401, %v400
    %v417 = vpack.c.b16 %v403, %v402
    %v418 = vpack.c.b16 %v405, %v404
    %v419 = vpack.c.b16 %v407, %v406
    %v420 = vpack.c.b16 %v409, %v408
    %v421 = vpack.c.b16 %v411, %v410
    %v422 = vpack.c.b16 %v413, %v412
    %v423 = vpack.c.b16 %v415, %v414
    %432 = vmatprep.subr.bf16.mxu0 0
    %433 = vmatpush1.bf16.msra.mxu0 %v416
    %434 = vmatprep.subr.bf16.mxu0 0
    %435 = vmatpush1.bf16.msra.mxu0 %v417
    %436 = vmatprep.subr.bf16.mxu0 0
    %437 = vmatpush1.bf16.msra.mxu0 %v418
    %438 = vmatprep.subr.bf16.mxu0 0
    %439 = vmatpush1.bf16.msra.mxu0 %v419
    %440 = vmatprep.subr.bf16.mxu0 0
    %441 = vmatpush1.bf16.msra.mxu0 %v420
    %442 = vmatprep.subr.bf16.mxu0 0
    %443 = vmatpush1.bf16.msra.mxu0 %v421
    %444 = vmatprep.subr.bf16.mxu0 0
    %445 = vmatpush1.bf16.msra.mxu0 %v422
    %446 = vmatprep.subr.bf16.mxu0 0
    %447 = vmatpush1.bf16.msra.mxu0 %v423
    %448 = vmatprep.subr.bf16.mxu0 0
    %449 = vmatpush1.bf16.msra.mxu0 0
    %450 = vmatprep.subr.bf16.mxu0 0
    %451 = vmatpush1.bf16.msra.mxu0 0
    %452 = vmatprep.subr.bf16.mxu0 0
    %453 = vmatpush1.bf16.msra.mxu0 0
    %454 = vmatprep.subr.bf16.mxu0 0
    %455 = vmatpush1.bf16.msra.mxu0 0
    %456 = vmatprep.subr.bf16.mxu0 0
    %457 = vmatpush1.bf16.msra.mxu0 0
    %458 = vmatprep.subr.bf16.mxu0 0
    %459 = vmatpush1.bf16.msra.mxu0 0
    %460 = vmatprep.subr.bf16.mxu0 0
    %461 = vmatpush1.bf16.msra.mxu0 0
    %462 = vmatprep.subr.bf16.mxu0 0
    %463 = vmatpush1.bf16.msra.mxu0 0
    %464 = vmatprep.mubr.bf16.mxu0 0
    %465 = vmatmul.mubr.bf16.gmra.mrb[0].mxu0 %v360
    %v466 = vpop.f32.mrb[0].mxu0
    %v467 = vadd.f32 %v382, %v466
    %v468 = vpop.f32.mrb[0].mxu0
    %v469 = vpop.f32.mrb[0].mxu0
    %v470 = vadd.f32 %v382, %v469
    %v471 = vpop.f32.mrb[0].mxu0
    %472 = vdwg.mxu0
    %473 = vst [vmem:[#allocation12] sm:$0xff] %v467
    %474 = vst [vmem:[#allocation12 + $0x8] sm:$0xff] %v470
    // Predicated region
    $region46: #{tpu_custom_call.1} parent=1 // pred_check
      _
    $region47: #{tpu_custom_call.1} parent=1 // pred_check_branch
      %476 = sbr.rel (0) target = $region49
    $region48: #{tpu_custom_call.1} parent=1 // pred_region
      %s478 = ssub.s32 256, 256
      %479 = vsyncadd [#allocation6], %s478
      %s480 = sshll.u32 [#allocation12], 4
      %s481 = int_to_ptr.vmem [resolvable:$true] %s480
      %486 = dma.vmem_to_hbm [thread:$0]  %s481, 256, %s8, [#allocation6], 128, 128, 8
    $region49: #{tpu_custom_call.1} parent=1 // pred_fallthru
      _
    // Predicated region
    $region50: #{tpu_custom_call.1} parent=1 // pred_check
      _
    $region51: #{tpu_custom_call.1} parent=1 // pred_check_branch
      %488 = sbr.rel (0) target = $region53
    $region52: #{tpu_custom_call.1} parent=1 // pred_region
      %489 = dma.done [#allocation6], 256
    $region53: #{tpu_custom_call.1} parent=1 // pred_fallthru
      _
    %490 = vsyncpa [#allocation5], 1
    %491 = vsyncpa [#allocation8], 1
    %492 = vsyncpa [#allocation11], 1
    %493 = vsyncpa [#allocation6], 1

</llo_original>
